<compile_context>
chip_gen: v5e
topology: v5e:2x2
jax: 0.10.0
libtpu: 0.0.40
codegen_flags: <defaults>
</compile_context>

<pallas_src>
import jax
import jax.numpy as jnp
from jax.experimental import pallas as pl
from jax.experimental.pallas import tpu as pltpu


def _round_up(x, m):
    return ((x + m - 1) // m) * m


# -----------------------------------------------------------------------------
# Kernel: one (tm, N) output block of  y = x @ W.
# K equals the full feature dim, so there is no reduction grid axis, no
# accumulator scratch and no pl.when gates.
# -----------------------------------------------------------------------------
def _matmul_kernel(x_ref, w_ref, o_ref):
    o_ref[...] = jnp.dot(
        x_ref[...], w_ref[...], preferred_element_type=jnp.float32
    ).astype(o_ref.dtype)


def _pick_tm(M, K, N, x_bytes, out_bytes, *, target_tm=4096,
             tile_vmem_budget=32 * 1024 * 1024):
    """Pick the batch tile: as large as the VMEM budget allows (double-buffered
    x tile + out tile), but keep >= 2 grid steps so the 'parallel' batch axis
    can shard across the two v7x TensorCores."""
    if M <= 8:
        return M  # tiny batch: one full-extent block
    per_row = 2 * (K * x_bytes + N * out_bytes)          # double-buffered
    vmem_cap = max(8, (tile_vmem_budget // per_row) // 8 * 8)
    two_step_cap = _round_up(-(-M // 2), 8)              # ceil(M/2), 8-aligned
    tm = min(target_tm, vmem_cap, two_step_cap, _round_up(M, 8))
    return max(tm, 8)


def _batched_matmul(x, w, *, out_dtype):
    """y = x @ w, streaming only the batch (M) axis through VMEM.

    * K and N are the (small) num_inputs dim: no padding, no K grid axis —
      block dims equal to the full array dims satisfy the (8,128) rule.
    * w is a single VMEM-resident block (constant index_map -> DMA'd once).
    * grid = cdiv(M, tm); Pallas clips the ragged trailing batch block (safe
      on M only: rows are independent, out-of-range rows are never stored).
    """
    M, K = x.shape
    K2, N = w.shape
    assert K == K2

    tm = _pick_tm(M, K, N, x.dtype.itemsize, jnp.dtype(out_dtype).itemsize)
    grid = (pl.cdiv(M, tm),)

    return pl.pallas_call(
        _matmul_kernel,
        out_shape=jax.ShapeDtypeStruct((M, N), out_dtype),
        grid=grid,
        in_specs=[
            pl.BlockSpec((tm, K), lambda i: (i, 0)),   # batch-streamed x
            pl.BlockSpec((K, N), lambda i: (0, 0)),    # resident weight
        ],
        out_specs=pl.BlockSpec((tm, N), lambda i: (i, 0)),
        compiler_params=pltpu.CompilerParams(
            dimension_semantics=("parallel",),
            vmem_limit_bytes=48 * 1024 * 1024,  # > v5e 16 MiB default, < v7x 64 MiB phys
        ),
    )(x, w)


# -----------------------------------------------------------------------------
# LUInvertibleMM forward
# -----------------------------------------------------------------------------
def _build_w(P, L, U, sign_S, log_S):
    """W = P @ (L*L_mask + I) @ (U*U_mask + diag(sign_S*exp(log_S))). Tiny."""
    d = L.shape[0]
    l_mask = jnp.tril(jnp.ones((d, d), L.dtype), -1)
    u_mask = l_mask.T
    eye = jnp.eye(d, dtype=L.dtype)
    l_full = L * l_mask + eye
    u_full = U * u_mask + jnp.diag(sign_S * jnp.exp(log_S))
    return P @ l_full @ u_full


def lu_invertible_mm_forward(inputs, P, L, U, sign_S, log_S, mode="direct",
                             compute_dtype=jnp.bfloat16):
    """inputs: (batch, num_inputs).  Returns (outputs, log_det[batch])."""
    W = _build_w(P, L, U, sign_S, log_S)        # parameter-only work, plain JAX
    batch = inputs.shape[0]
    out_dtype = inputs.dtype

    if mode != "direct":
        # torch.inverse(W): tiny (d, d) parameter matrix -> plain JAX inverse;
        # the big batch matmul still runs through the Pallas kernel.
        W = jnp.linalg.inv(W)

    # bf16 operands halve the dominant x HBM read and hit the native bf16 MXU;
    # accumulation stays f32 inside the kernel (preferred_element_type).
    # TODO(synk): in a real flow stack the activations would already be bf16,
    # making this cast free; here it is a small extra XLA pass.
    x_c = inputs.astype(compute_dtype)
    w_c = W.astype(compute_dtype)
    y = _batched_matmul(x_c, w_c, out_dtype=out_dtype)

    s = jnp.sum(log_S)
    if mode != "direct":
        s = -s
    log_det = jnp.broadcast_to(s, (batch,))
    return y, log_det


# -----------------------------------------------------------------------------
# Pure-JAX reference for correctness check
# -----------------------------------------------------------------------------
def reference_forward(inputs, P, L, U, sign_S, log_S, mode="direct"):
    W = _build_w(P, L, U, sign_S, log_S)
    if mode == "direct":
        y = inputs @ W
        s = jnp.sum(log_S)
    else:
        y = inputs @ jnp.linalg.inv(W)
        s = -jnp.sum(log_S)
    log_det = jnp.broadcast_to(s, (inputs.shape[0],))
    return y, log_det


if __name__ == "__main__":
    batch, num_inputs = 16, 32

    key = jax.random.PRNGKey(0)
    kx, kw, kl, ku, ks = jax.random.split(key, 5)

    # Mirror the module's init: orthogonal W, LU-decompose, sign/log of diag(U).
    A = jax.random.normal(kw, (num_inputs, num_inputs), dtype=jnp.float32)
    W0, _ = jnp.linalg.qr(A)                       # orthogonal init
    P, L0, U0 = jax.scipy.linalg.lu(W0)            # W0 = P @ L0 @ U0
    S = jnp.diag(U0)
    sign_S = jnp.sign(S)
    log_S = jnp.log(jnp.abs(S))

    # L/U/log_S are trainable; perturb them so the transform is nontrivial.
    L = L0 + 0.05 * jax.random.normal(kl, (num_inputs, num_inputs), jnp.float32)
    U = U0 + 0.05 * jax.random.normal(ku, (num_inputs, num_inputs), jnp.float32)
    log_S = log_S + 0.05 * jax.random.normal(ks, (num_inputs,), jnp.float32)

    x = jax.random.normal(kx, (batch, num_inputs), dtype=jnp.float32)

    fwd = jax.jit(lu_invertible_mm_forward, static_argnames=("mode",))

    # --- direct mode ---
    y, log_det = fwd(x, P, L, U, sign_S, log_S)
    jax.block_until_ready((y, log_det))
    y_ref, ld_ref = reference_forward(x, P, L, U, sign_S, log_S)

    assert y.shape == (batch, num_inputs) and log_det.shape == (batch,)
    # bf16 MXU operands vs f32 XLA reference: tolerance covers bf16 rounding.
    assert jnp.allclose(y, y_ref, atol=3e-2, rtol=3e-2), "direct output mismatch"
    assert jnp.allclose(log_det, ld_ref, atol=1e-5, rtol=1e-5), "log_det mismatch"

    # --- inverse mode ---
    y_inv, ld_inv = fwd(x, P, L, U, sign_S, log_S, mode="inverse")
    jax.block_until_ready((y_inv, ld_inv))
    yi_ref, ldi_ref = reference_forward(x, P, L, U, sign_S, log_S, mode="inverse")
    assert jnp.allclose(y_inv, yi_ref, atol=5e-2, rtol=5e-2), "inverse output mismatch"
    assert jnp.allclose(ld_inv, ldi_ref, atol=1e-5, rtol=1e-5), "inverse log_det mismatch"

    print("KERNEL_OK")
</pallas_src>

<mosaic_0001>
module attributes {stable_mosaic.version = 11 : i64} {
  func.func @_matmul_kernel(%arg0: i32, %arg1: memref<8x32xbf16, #tpu.memory_space<vmem>>, %arg2: memref<32x32xbf16, #tpu.memory_space<vmem>>, %arg3: memref<8x32xf32, #tpu.memory_space<vmem>>) attributes {dimension_semantics = [#tpu.dimension_semantics<parallel>], iteration_bounds = array<i64: 2>, scalar_prefetch = 0 : i64, scratch_operands = 0 : i64, tpu.core_type = #tpu.core_type<tc>, window_params = [{transform_indices = @transform_0, window_bounds = array<i64: 8, 32>}, {pipeline_mode = #tpu.pipeline_mode<synchronous>, transform_indices = @transform_1, window_bounds = array<i64: 32, 32>}, {transform_indices = @transform_2, window_bounds = array<i64: 8, 32>}]} {
    %c0 = arith.constant 0 : index
    %c0_0 = arith.constant 0 : index
    %0 = vector.load %arg1[%c0, %c0_0] : memref<8x32xbf16, #tpu.memory_space<vmem>>, vector<8x32xbf16>
    %c0_1 = arith.constant 0 : index
    %c0_2 = arith.constant 0 : index
    %1 = vector.load %arg2[%c0_1, %c0_2] : memref<32x32xbf16, #tpu.memory_space<vmem>>, vector<32x32xbf16>
    %cst = arith.constant dense<0.000000e+00> : vector<8x32xf32>
    %2 = tpu.matmul %0, %1, %cst {dimension_numbers = #tpu.dot_dimension_numbers<[1], [0], [0], [1], [0, 0, 1, 1], [], []>} : vector<8x32xbf16>, vector<32x32xbf16>, vector<8x32xf32> -> vector<8x32xf32>
    %c0_3 = arith.constant 0 : index
    %c0_4 = arith.constant 0 : index
    %3 = vector.load %arg3[%c0_3, %c0_4] : memref<8x32xf32, #tpu.memory_space<vmem>>, vector<8x32xf32>
    tpu.vector_store %arg3[%c0_3, %c0_4], %2 {strides = array<i32>} : memref<8x32xf32, #tpu.memory_space<vmem>>, vector<8x32xf32>,
    return
  }
  func.func @transform_0(%arg0: i32) -> (i32, i32) {
    %c0_i32 = arith.constant 0 : i32
    %c0_i32_0 = arith.constant 0 : i32
    return %arg0, %c0_i32 : i32, i32
  }
  func.func @transform_1(%arg0: i32) -> (i32, i32) {
    %c0_i32 = arith.constant 0 : i32
    %c0_i32_0 = arith.constant 0 : i32
    %c0_i32_1 = arith.constant 0 : i32
    return %c0_i32, %c0_i32_0 : i32, i32
  }
  func.func @transform_2(%arg0: i32) -> (i32, i32) {
    %c0_i32 = arith.constant 0 : i32
    %c0_i32_0 = arith.constant 0 : i32
    return %arg0, %c0_i32 : i32, i32
  }
}

</mosaic_0001>

<llo_original>
// kernel: lu_invertible_mm_forward.1
$region0: #{lu_invertible_mm_forward.1}
  #allocation0 [shape = 'u32[]', space=smem, size = 0x4, offset = 0x4, fixed_abs, tag = 'smem constant byte address 0x4 - core index']
  #allocation1 [shape = 'u32[72,128]{1,0:T(1,128)}', space=vmem, size = 0x9000, scoped, tag = 'internal scratch']
  %s0 = inlined_call_operand.vmem [shape: bf16[16,32], index: 0, kind: input, shape index: {}]
  %s1 = inlined_call_operand.vmem [shape: bf16[32,32], index: 1, kind: input, shape index: {}]
  %s2 = inlined_call_operand.hbm [shape: f32[16,32], index: 2, kind: output, shape index: {}]
  %s3 = sld [smem:[#allocation0]]
  $region41: #{lu_invertible_mm_forward.1} parent=0
    _
  %s5 = ssub.s32 1, %s3
  %s6 = scalar_select 0, %s5, %s3
  $region1: #{lu_invertible_mm_forward.1} parent=0
    #allocation2 [shape = 'u8[8192]{0}', space=vmem, size = 0x2000, scoped, tag = 'output window, operand 0']
    #allocation3 [shape = 's32[2]{0}', space=sflag, size = 0x8, scoped, tag = 'scoped memory for lu_invertible_mm_forward.1']
    %7 = vsyncpa [#allocation3], 0
    %s8 = scalar_lea.sflag [#allocation3], 1
    %9 = vsyncpa %s8, 0
    loop: start=0, step=1, limit=4
    $region2: #{lu_invertible_mm_forward.1} parent=1 // loop_pre_header
      _
    $region3: #{lu_invertible_mm_forward.1} parent=1 // loop_header
      %s11 = sphi 0, %s15
      %p12 = scmp.ge.s32.totalorder %s11, 4
      %s21 = sphi 0, %s23
      %s24 = sphi 0, %s21
      %s25 = sphi 0, %s24
      %s41 = sphi 0, %s25
      %s45 = sphi 0, %s45
      %s47 = sphi 0, %s45
      %s48 = sphi 0, %s47
      %s62 = sphi 0, %s48
      %s68 = sphi 0, %s70
      %s71 = sphi 0, %s68
      %s72 = sphi 0, %s71
      %s88 = sphi 0, %s72
    $region4: #{lu_invertible_mm_forward.1} parent=1 // loop_header_branch
      %14 = sbr.rel (%p12) target = $region8
    $region5: #{lu_invertible_mm_forward.1} parent=1 // loop_body
      %s16 = ssub.s32 %s11, 1
      %s17 = ssub.s32 %s11, 2
      %s18 = sadd.s32 %s11, 1
      %s19 = ssub.s32 %s11, %s18
      %p20 = scmp.eq.s32.totalorder %s19, 0
      %s22 = sadd.s32 %s21, 1
      %s23 = scalar_select %p20, %s21, %s22
      %p26 = pneg %p20
      %p27 = scmp.eq.s32.totalorder %s11, 1
      %p28 = por %p26, %p27
      %p29 = scmp.ne.s32.totalorder %s21, %s24
      %p30 = scmp.eq.s32.totalorder %s11, 0
      %p31 = por %p29, %p30
      %p32 = scmp.ne.s32.totalorder %s21, %s24
      %p33 = scmp.eq.s32.totalorder %s16, 1
      %p34 = por %p32, %p33
      %p35 = scmp.ne.s32.totalorder %s24, %s25
      %p36 = scmp.eq.s32.totalorder %s16, 0
      %p37 = por %p35, %p36
      %p38 = scmp.ne.s32.totalorder %s24, %s25
      %p39 = scmp.eq.s32.totalorder %s17, 1
      %p40 = por %p38, %p39
      %p42 = scmp.ne.s32.totalorder %s25, %s41
      %p43 = scmp.eq.s32.totalorder %s17, 0
      %p44 = por %p42, %p43
      %s46 = sadd.s32 %s45, 1
      %p49 = scmp.eq.s32.totalorder %s11, 1
      %p50 = scmp.ne.s32.totalorder %s45, %s47
      %p51 = scmp.eq.s32.totalorder %s11, 0
      %p52 = por %p50, %p51
      %p53 = scmp.ne.s32.totalorder %s45, %s47
      %p54 = scmp.eq.s32.totalorder %s16, 1
      %p55 = por %p53, %p54
      %p56 = scmp.ne.s32.totalorder %s47, %s48
      %p57 = scmp.eq.s32.totalorder %s16, 0
      %p58 = por %p56, %p57
      %p59 = scmp.ne.s32.totalorder %s47, %s48
      %p60 = scmp.eq.s32.totalorder %s17, 1
      %p61 = por %p59, %p60
      %p63 = scmp.ne.s32.totalorder %s48, %s62
      %p64 = scmp.eq.s32.totalorder %s17, 0
      %p65 = por %p63, %p64
      %s66 = ssub.s32 %s11, %s18
      %p67 = scmp.eq.s32.totalorder %s66, 0
      %s69 = sadd.s32 %s68, 1
      %s70 = scalar_select %p67, %s68, %s69
      %p73 = pneg %p67
      %p74 = scmp.eq.s32.totalorder %s11, 1
      %p75 = por %p73, %p74
      %p76 = scmp.ne.s32.totalorder %s68, %s71
      %p77 = scmp.eq.s32.totalorder %s11, 0
      %p78 = por %p76, %p77
      %p79 = scmp.ne.s32.totalorder %s68, %s71
      %p80 = scmp.eq.s32.totalorder %s16, 1
      %p81 = por %p79, %p80
      %p82 = scmp.ne.s32.totalorder %s71, %s72
      %p83 = scmp.eq.s32.totalorder %s16, 0
      %p84 = por %p82, %p83
      %p85 = scmp.ne.s32.totalorder %s71, %s72
      %p86 = scmp.eq.s32.totalorder %s17, 1
      %p87 = por %p85, %p86
      %p89 = scmp.ne.s32.totalorder %s72, %s88
      %p90 = scmp.eq.s32.totalorder %s17, 0
      %p91 = por %p89, %p90
      %p92 = scmp.le.s32.totalorder 1, %s11
      %p93 = scmp.lt.s32.totalorder %s11, 3
      %p94 = pnand %p92, %p93
      %p95 = pneg %p94
      // Predicated region
      $region9: #{lu_invertible_mm_forward.1} parent=5 // pred_check
        _
      $region10: #{lu_invertible_mm_forward.1} parent=5 // pred_check_branch
        %97 = sbr.rel (%p94) target = $region12
      $region11: #{lu_invertible_mm_forward.1} parent=5 // pred_region
        %s98 = ssub.s32 %s11, 1
        // Predicated region
        $region13: #{lu_invertible_mm_forward.1} parent=11 // pred_check
          %p99 = pneg %p58
        $region14: #{lu_invertible_mm_forward.1} parent=11 // pred_check_branch
          %101 = sbr.rel (%p99) target = $region16
        $region15: #{lu_invertible_mm_forward.1} parent=11 // pred_region
          _
        $region16: #{lu_invertible_mm_forward.1} parent=11 // pred_fallthru
          _
      $region12: #{lu_invertible_mm_forward.1} parent=5 // pred_fallthru
        _
      %p102 = scmp.lt.s32.totalorder %s11, 2
      // Predicated region
      $region17: #{lu_invertible_mm_forward.1} parent=5 // pred_check
        %p103 = pneg %p102
      $region18: #{lu_invertible_mm_forward.1} parent=5 // pred_check_branch
        %105 = sbr.rel (%p103) target = $region20
      $region19: #{lu_invertible_mm_forward.1} parent=5 // pred_region
        // Predicated region
        $region21: #{lu_invertible_mm_forward.1} parent=19 // pred_check
          %p106 = pneg %p31
        $region22: #{lu_invertible_mm_forward.1} parent=19 // pred_check_branch
          %108 = sbr.rel (%p106) target = $region24
        $region23: #{lu_invertible_mm_forward.1} parent=19 // pred_region
          %p109 = scmp.lt.s32.totalorder %s11, 1
          %s110 = scalar_select %p109, %s11, 1
          %s111 = smul.addr %s110, 4
          %s112 = scalar_lea.vmem %s0, %s111
        $region24: #{lu_invertible_mm_forward.1} parent=19 // pred_fallthru
          _
      $region20: #{lu_invertible_mm_forward.1} parent=5 // pred_fallthru
        _
      %p113 = scmp.le.s32.totalorder 1, %s11
      %p114 = scmp.lt.s32.totalorder %s11, 3
      %p115 = pnand %p113, %p114
      %p116 = pneg %p115
      // Predicated region
      $region25: #{lu_invertible_mm_forward.1} parent=5 // pred_check
        _
      $region26: #{lu_invertible_mm_forward.1} parent=5 // pred_check_branch
        %118 = sbr.rel (%p115) target = $region28
      $region27: #{lu_invertible_mm_forward.1} parent=5 // pred_region
        %s119 = ssub.s32 %s11, 1
        %p120 = scmp.lt.s32.totalorder %s16, 1
        %s121 = scalar_select %p120, %s16, 1
        %s122 = smul.addr %s121, 4
        %s123 = scalar_lea.vmem %s0, %s122
        %p124 = pneg %p37
        %p125 = pneg %p34
        %p126 = pneg %p58
        %p127 = pneg %p55
        %p128 = pneg %p84
        %p129 = pneg %p81
        %s130 = sand.u32 %s71, 1
        %s131 = scalar_lea.sflag [#allocation3], %s130
        %s132 = sand.u32 %s71, 1
        %s133 = smul.addr %s132, 8
        %s134 = scalar_lea.vmem [#allocation2], %s133
        %p135 = scmp.lt.s32.totalorder %s16, 1
        %s136 = scalar_select %p135, %s16, 1
        %s137 = smul.addr %s136, 4
        %s138 = scalar_lea.vmem %s0, %s137
        %v140 = vld [vmem:[%s138] sm:$0xf]
        %v141 = vld [vmem:[%s1] sm:$0xf]
        %v142 = vld [vmem:[%s1 + $0x4] sm:$0xf]
        %v143 = vld [vmem:[%s1 + $0x8] sm:$0xf]
        %v144 = vld [vmem:[%s1 + $0xc] sm:$0xf]
        %v149 = vunpack.c.l.b16 %v141
        %v150 = vunpack.c.l.b16 %v142
        %v151 = vunpack.c.l.b16 %v143
        %v152 = vunpack.c.l.b16 %v144
        %v153 = vpack.c.b16 %v150, %v149
        %v154 = vpack.c.b16 %v152, %v151
        %vm157 = vcmask 261120
        %v159 = vsel %vm157, %v140, 0
        %161 = vmatpush.bf16.msra.mxu0 0
        %162 = vmatpush.bf16.msra.mxu0 0
        %163 = vmatpush.bf16.msra.mxu0 0
        %164 = vmatpush.bf16.msra.mxu0 0
        %165 = vmatpush.bf16.msra.mxu0 0
        %166 = vmatpush.bf16.msra.mxu0 0
        %167 = vmatpush.bf16.msra.mxu0 %v154
        %168 = vmatpush.bf16.msra.mxu0 %v153
        %169 = vmatmul.bf16.gmra.mxu0 %v159
        %v170 = vpop.f32.mrf.mxu0
        %v171 = vadd.f32 0.0, %v170
        %v172 = vpop.f32.mrf.mxu0
        %173 = vdwg.mxu0
        %174 = vst.msk [vmem:[%s134] sm:$0xff] %vm157, %v171
        %s175 = sand.u32 %s71, 1
        %s176 = scalar_lea.sflag [#allocation3], %s175
        %s177 = sand.u32 %s71, 1
        %s178 = smul.addr %s177, 8
        %s179 = scalar_lea.vmem [#allocation2], %s178
        // Predicated region
        $region29: #{lu_invertible_mm_forward.1} parent=27 // pred_check
          %p180 = pneg %p81
        $region30: #{lu_invertible_mm_forward.1} parent=27 // pred_check_branch
          %182 = sbr.rel (%p180) target = $region32
        $region31: #{lu_invertible_mm_forward.1} parent=27 // pred_region
          %184 = vsyncadd %s176, 0
          %s185 = smul.addr %s16, 8
          %s186 = scalar_lea.hbm %s2, %s185
          %s188 = sshll.u32 %s179, 4
          %s189 = int_to_ptr.vmem [resolvable:$true] %s188
          %s190 = sshll.u32 %s186, 4
          %s191 = int_to_ptr.hbm [resolvable:$true] %s190
          %193 = dma.vmem_to_hbm [thread:$0]  %s189, 128, %s191, %s176
        $region32: #{lu_invertible_mm_forward.1} parent=27 // pred_fallthru
          _
      $region28: #{lu_invertible_mm_forward.1} parent=5 // pred_fallthru
        _
      %p194 = scmp.le.s32.totalorder 2, %s11
      // Predicated region
      $region33: #{lu_invertible_mm_forward.1} parent=5 // pred_check
        %p195 = pneg %p194
      $region34: #{lu_invertible_mm_forward.1} parent=5 // pred_check_branch
        %197 = sbr.rel (%p195) target = $region36
      $region35: #{lu_invertible_mm_forward.1} parent=5 // pred_region
        %s198 = ssub.s32 %s11, 2
        // Predicated region
        $region37: #{lu_invertible_mm_forward.1} parent=35 // pred_check
          %p199 = pneg %p87
        $region38: #{lu_invertible_mm_forward.1} parent=35 // pred_check_branch
          %201 = sbr.rel (%p199) target = $region40
        $region39: #{lu_invertible_mm_forward.1} parent=35 // pred_region
          %s202 = sand.u32 %s72, 1
          %s203 = scalar_lea.sflag [#allocation3], %s202
          %s204 = sand.u32 %s72, 1
          %s205 = smul.addr %s204, 8
          %s206 = scalar_lea.vmem [#allocation2], %s205
          %208 = dma.done %s203, 128
        $region40: #{lu_invertible_mm_forward.1} parent=35 // pred_fallthru
          _
      $region36: #{lu_invertible_mm_forward.1} parent=5 // pred_fallthru
        _
    $region6: #{lu_invertible_mm_forward.1} parent=1 // loop_footer
      %s15 = sadd.s32 1, %s11
    $region7: #{lu_invertible_mm_forward.1} parent=1 // loop_footer_branch
      %10 = sbr.rel target = $region3
    $region8: #{lu_invertible_mm_forward.1} parent=1 // loop_exit
      _
    %209 = vsyncpa [#allocation3], 1
    %s210 = scalar_lea.sflag [#allocation3], 1
    %211 = vsyncpa %s210, 1

</llo_original>
